<compile_context>
chip_gen: v7x
topology: tpu7x:2x2x1
jax: 0.10.0
libtpu: 0.0.40
codegen_flags: <defaults>
</compile_context>

<pallas_src>
import jax
import jax.numpy as jnp
from jax.experimental import pallas as pl
from jax.experimental.pallas import tpu as pltpu

_LANE = 128


def _swish_kernel(x_ref, o_ref):
    xf = x_ref[...].astype(jnp.float32)
    # x * sigmoid(x) = x / (1 + exp(-x)); exp and the approximate reciprocal
    # both go to the EUP slot, leaving the VPU nearly idle (free headroom if
    # this ever gets fused with other vector work).
    sig = pl.reciprocal(1.0 + jnp.exp(-xf), approx=True)
    o_ref[...] = (xf * sig).astype(o_ref.dtype)


def swish(x, *, target_block_bytes=2 * 1024 * 1024):
    """Elementwise swish on an arbitrary-shaped array via a Pallas TPU kernel."""
    orig_shape = x.shape
    dtype = x.dtype
    n = x.size
    itemsize = jnp.dtype(dtype).itemsize

    x_flat = jnp.ravel(x)

    # Pad only up to a lane multiple (<= 127 elements) and only when required,
    # so the common case (conv feature maps) adds zero extra HBM passes.
    padded = (n % _LANE) != 0
    n_pad = pl.cdiv(n, _LANE) * _LANE if padded else n
    if padded:
        x_flat = jnp.pad(x_flat, (0, n_pad - n))

    # Choose a wide last dim (multiple of 128) from divisors of the flat size.
    width = _LANE
    for w in (4096, 2048, 1024, 512, 256):
        if n_pad % w == 0:
            width = w
            break
    rows = n_pad // width
    x2d = x_flat.reshape(rows, width)

    # Size tile_rows so one block is ~target_block_bytes (sublane multiple of 8).
    tile_rows = max(8, target_block_bytes // (width * itemsize))
    tile_rows = (tile_rows // 8) * 8
    if tile_rows >= rows:
        tile_rows = rows  # single block covering the full row dim is legal
    grid = (pl.cdiv(rows, tile_rows),)

    out2d = pl.pallas_call(
        _swish_kernel,
        out_shape=jax.ShapeDtypeStruct((rows, width), dtype),
        grid_spec=pltpu.PrefetchScalarGridSpec(
            num_scalar_prefetch=0,
            grid=grid,
            in_specs=[pl.BlockSpec((tile_rows, width), lambda i: (i, 0))],
            out_specs=pl.BlockSpec((tile_rows, width), lambda i: (i, 0)),
        ),
        compiler_params=pltpu.CompilerParams(
            dimension_semantics=("parallel",),
            vmem_limit_bytes=32 * 1024 * 1024,  # safe on v5e/v6e/v7x; >> 8 MiB used
        ),
        cost_estimate=pl.CostEstimate(
            flops=3 * n,
            transcendentals=n,
            bytes_accessed=2 * n * itemsize,
        ),
    )(x2d)

    if padded:
        return out2d.reshape(-1)[:n].reshape(orig_shape)
    return out2d.reshape(orig_shape)


if __name__ == "__main__":
    key = jax.random.PRNGKey(0)
    # NCHW input matching the PyTorch module: batch=2, channels=4, 16x16 spatial.
    x = jax.random.normal(key, (2, 4, 16, 16), dtype=jnp.float32)
    y = jax.block_until_ready(swish(x))
    y_ref = x * jax.nn.sigmoid(x)
    assert y.shape == x.shape and y.dtype == x.dtype
    # Tolerance accounts for the EUP approximate-reciprocal sigmoid.
    assert jnp.allclose(y, y_ref, rtol=5e-2, atol=1e-3)

    # Also exercise the non-128-multiple (pad + tail-slice) path.
    x2 = jax.random.normal(jax.random.PRNGKey(1), (3, 5, 7, 11), dtype=jnp.float32)
    y2 = jax.block_until_ready(swish(x2))
    y2_ref = x2 * jax.nn.sigmoid(x2)
    assert y2.shape == x2.shape and y2.dtype == x2.dtype
    assert jnp.allclose(y2, y2_ref, rtol=5e-2, atol=1e-3)

    print("KERNEL_OK")
</pallas_src>

<mosaic_0001>
module attributes {stable_mosaic.version = 11 : i64} {
  func.func @_swish_kernel(%arg0: i32, %arg1: memref<1x2048xf32, #tpu.memory_space<vmem>>, %arg2: memref<1x2048xf32, #tpu.memory_space<vmem>>) attributes {dimension_semantics = [#tpu.dimension_semantics<parallel>], iteration_bounds = array<i64: 1>, scalar_prefetch = 0 : i64, scratch_operands = 0 : i64, tpu.core_type = #tpu.core_type<tc>, window_params = [{transform_indices = @transform_0, window_bounds = array<i64: 1, 2048>}, {transform_indices = @transform_1, window_bounds = array<i64: 1, 2048>}]} {
    %c0 = arith.constant 0 : index
    %c0_0 = arith.constant 0 : index
    %0 = vector.load %arg1[%c0, %c0_0] : memref<1x2048xf32, #tpu.memory_space<vmem>>, vector<1x2048xf32>
    %cst = arith.constant 0.000000e+00 : f32
    %1 = vector.broadcast %cst : f32 to vector<1x2048xf32>
    %2 = arith.subf %1, %0 : vector<1x2048xf32>
    %3 = math.exp %2 : vector<1x2048xf32>
    %cst_1 = arith.constant 1.000000e+00 : f32
    %4 = vector.broadcast %cst_1 : f32 to vector<1x2048xf32>
    %5 = arith.addf %4, %3 : vector<1x2048xf32>
    %6 = tpu.reciprocal %5 {approx = true} : vector<1x2048xf32> -> vector<1x2048xf32>
    %7 = arith.mulf %0, %6 : vector<1x2048xf32>
    %c0_2 = arith.constant 0 : index
    %c0_3 = arith.constant 0 : index
    %8 = vector.load %arg2[%c0_2, %c0_3] : memref<1x2048xf32, #tpu.memory_space<vmem>>, vector<1x2048xf32>
    tpu.vector_store %arg2[%c0_2, %c0_3], %7 {strides = array<i32>} : memref<1x2048xf32, #tpu.memory_space<vmem>>, vector<1x2048xf32>,
    return
  }
  func.func @transform_0(%arg0: i32) -> (i32, i32) {
    %c0_i32 = arith.constant 0 : i32
    %c0_i32_0 = arith.constant 0 : i32
    return %arg0, %c0_i32 : i32, i32
  }
  func.func @transform_1(%arg0: i32) -> (i32, i32) {
    %c0_i32 = arith.constant 0 : i32
    %c0_i32_0 = arith.constant 0 : i32
    return %arg0, %c0_i32 : i32, i32
  }
}

</mosaic_0001>

<llo_original>
// kernel: tpu_custom_call.1
$region0: #{tpu_custom_call.1}
  #allocation0 [shape = 'u32[]', space=smem, size = 0x4, offset = 0x4, fixed_abs, tag = 'smem constant byte address 0x4 - core index']
  #allocation1 [shape = 'u32[144,128]{1,0:T(1,128)}', space=vmem, size = 0x12000, scoped, tag = 'internal scratch']
  %s0 = inlined_call_operand.hbm [shape: f32[1,2048], index: 0, kind: input, shape index: {}]
  %s1 = inlined_call_operand.hbm [shape: f32[1,2048], index: 1, kind: output, shape index: {}]
  %s2 = sld [smem:[#allocation0]]
  $region18: #{tpu_custom_call.1} parent=0
    _
  %s4 = ssub.s32 1, %s2
  %s5 = scalar_select 0, %s4, %s2
  $region1: #{tpu_custom_call.1} parent=0
    #allocation2 [shape = 'u8[8192]{0}', space=vmem, size = 0x2000, scoped, tag = 'input window, operand 0, single buffered']
    #allocation3 [shape = 's32[1]{0}', space=sflag, size = 0x4, scoped, tag = 'scoped memory for tpu_custom_call.1']
    #allocation4 [shape = 's32[1]{0}', space=sflag, size = 0x4, scoped, tag = 'scoped memory for tpu_custom_call.1']
    #allocation5 [shape = 'u8[8192]{0}', space=vmem, size = 0x2000, scoped, tag = 'output window, operand 0, single buffered']
    %6 = vsyncpa [#allocation3], 0
    %7 = vsyncpa [#allocation4], 0
    // Predicated region
    $region2: #{tpu_custom_call.1} parent=1 // pred_check
      _
    $region3: #{tpu_custom_call.1} parent=1 // pred_check_branch
      %9 = sbr.rel (0) target = $region5
    $region4: #{tpu_custom_call.1} parent=1 // pred_region
      %s11 = ssub.s32 256, 256
      %12 = vsyncadd [#allocation3], %s11
      %s14 = sshll.u32 [#allocation2], 4
      %s15 = int_to_ptr.vmem [resolvable:$true] %s14
      %17 = dma.hbm_to_vmem [thread:$0]  %s0, 256, %s15, [#allocation3]
    $region5: #{tpu_custom_call.1} parent=1 // pred_fallthru
      _
    // Predicated region
    $region6: #{tpu_custom_call.1} parent=1 // pred_check
      _
    $region7: #{tpu_custom_call.1} parent=1 // pred_check_branch
      %19 = sbr.rel (0) target = $region9
    $region8: #{tpu_custom_call.1} parent=1 // pred_region
      %20 = dma.done [#allocation3], 256
    $region9: #{tpu_custom_call.1} parent=1 // pred_fallthru
      _
    %v21 = vld [vmem:[#allocation2] sm:$0xff]
    %v22 = vld [vmem:[#allocation2 + $0x8] sm:$0xff]
    %v23 = vsub.f32 0.0, %v21
    %v24 = vsub.f32 0.0, %v22
    %v25 = vmul.f32 %v23, 1.442695
    %v26 = vpow.pop %v25
    %v27 = vmul.f32 %v24, 1.442695
    %v28 = vpow.pop %v27
    %v29 = vadd.f32 %v26, 1.0
    %v30 = vadd.f32 %v28, 1.0
    %v31 = vrcp.pop %v29
    %v32 = vrcp.pop %v30
    %v33 = vmul.f32 %v21, %v31
    %v34 = vmul.f32 %v22, %v32
    %35 = vst [vmem:[#allocation5] sm:$0xff] %v33
    %36 = vst [vmem:[#allocation5 + $0x8] sm:$0xff] %v34
    // Predicated region
    $region10: #{tpu_custom_call.1} parent=1 // pred_check
      _
    $region11: #{tpu_custom_call.1} parent=1 // pred_check_branch
      %38 = sbr.rel (0) target = $region13
    $region12: #{tpu_custom_call.1} parent=1 // pred_region
      %s40 = ssub.s32 256, 256
      %41 = vsyncadd [#allocation4], %s40
      %s43 = sshll.u32 [#allocation5], 4
      %s44 = int_to_ptr.vmem [resolvable:$true] %s43
      %46 = dma.vmem_to_hbm [thread:$0]  %s44, 256, %s1, [#allocation4]
    $region13: #{tpu_custom_call.1} parent=1 // pred_fallthru
      _
    // Predicated region
    $region14: #{tpu_custom_call.1} parent=1 // pred_check
      _
    $region15: #{tpu_custom_call.1} parent=1 // pred_check_branch
      %48 = sbr.rel (0) target = $region17
    $region16: #{tpu_custom_call.1} parent=1 // pred_region
      %49 = dma.done [#allocation4], 256
    $region17: #{tpu_custom_call.1} parent=1 // pred_fallthru
      _
    %50 = vsyncpa [#allocation3], 1
    %51 = vsyncpa [#allocation4], 1

</llo_original>
